<compile_context>
chip_gen: v5e
topology: v5e:2x2
jax: 0.10.0
libtpu: 0.0.40
codegen_flags: <defaults>
</compile_context>

<pallas_src>
import jax
import jax.numpy as jnp
from jax import lax
from jax.experimental import pallas as pl
from jax.experimental.pallas import tpu as pltpu

D = 32    # config.SIZE_EXP_NODE_FEATURE
N = 8     # number of CFG nodes produced by the (stubbed) encoder
TB = 8    # batch rows per grid step (multiple of 8 sublanes)

_EPS = 1e-8   # torch.cosine_similarity eps


def cfg_embedding_kernel(nodes_ref, vecs_ref, out_ref):
    nodes = nodes_ref[...]            # (N, D)   cfg_emb from the encoder (shared)
    state = vecs_ref[0]               # (TB, D)  stateVec
    att   = vecs_ref[1]               # (TB, D)  attvec (parameter, broadcast)
    smt   = vecs_ref[2]               # (TB, D)  emb_smt
    ce    = vecs_ref[3]               # (TB, D)  emb_CE

    # weighted1_b = stateVec_b @ cfg_emb^T  -> (TB, N)
    # cfg_b       = weighted1_b @ cfg_emb   -> (TB, D)
    # Both contractions go to the MXU (frees XLU slots for the cosine reduces).
    w = lax.dot_general(state, nodes, (((1,), (1,)), ((), ())),
                        preferred_element_type=jnp.float32)        # (TB, N)
    cfg = jnp.dot(w, nodes, preferred_element_type=jnp.float32)    # (TB, D)

    # Cosine similarities against attvec; 1/max(||x||, eps) via EUP rsqrt.
    def inv_norm(x):
        n2 = jnp.sum(x * x, axis=-1, keepdims=True)                # lane reduce
        return lax.rsqrt(jnp.maximum(n2, _EPS * _EPS))             # (TB, 1)

    inv_att = inv_norm(att)
    c0 = jnp.sum(cfg * att, axis=-1, keepdims=True) * inv_norm(cfg) * inv_att
    c1 = jnp.sum(smt * att, axis=-1, keepdims=True) * inv_norm(smt) * inv_att
    c2 = jnp.sum(ce  * att, axis=-1, keepdims=True) * inv_norm(ce)  * inv_att

    # 3-way softmax over [c0, c1, c2] and weighted sum of [cfg, smt, ce].
    m  = jnp.maximum(jnp.maximum(c0, c1), c2)
    e0 = jnp.exp(c0 - m)
    e1 = jnp.exp(c1 - m)
    e2 = jnp.exp(c2 - m)
    inv_z = pl.reciprocal(e0 + e1 + e2, approx=True)               # EUP slot
    out_ref[...] = ((e0 * cfg + e1 * smt + e2 * ce) * inv_z).astype(out_ref.dtype)


def cfg_embedding_forward(node_emb, emb_smt, emb_CE, stateVec, attvec):
    """node_emb: (N, D); emb_smt/emb_CE/stateVec: (B, D); attvec: (1, D) -> (B, D)."""
    n_nodes, d = node_emb.shape
    B = stateVec.shape[0]
    assert d == D and emb_smt.shape == (B, D) and emb_CE.shape == (B, D)

    # Pack the per-instance vectors (plus the broadcast attvec parameter) into a
    # single (4, B, D) input: one DMA descriptor instead of four tiny ones.
    vecs = jnp.stack(
        [stateVec, jnp.broadcast_to(attvec, (B, D)), emb_smt, emb_CE], axis=0
    ).astype(jnp.float32)

    b_pad = pl.cdiv(B, TB) * TB
    if b_pad != B:
        # Zero padding rows give cos = 0 (eps clamp) -> finite; sliced off below.
        vecs = jnp.pad(vecs, ((0, 0), (0, b_pad - B), (0, 0)))

    out = pl.pallas_call(
        cfg_embedding_kernel,
        out_shape=jax.ShapeDtypeStruct((b_pad, D), jnp.float32),
        grid_spec=pltpu.PrefetchScalarGridSpec(
            num_scalar_prefetch=0,
            grid=(b_pad // TB,),
            in_specs=[
                pl.BlockSpec((n_nodes, D), lambda i: (0, 0)),    # shared node embeddings
                pl.BlockSpec((4, TB, D), lambda i: (0, i, 0)),   # packed per-instance vectors
            ],
            out_specs=pl.BlockSpec((TB, D), lambda i: (i, 0)),
        ),
        compiler_params=pltpu.CompilerParams(
            dimension_semantics=("parallel",)),                  # shard batch across TCs (v7x)
    )(node_emb.astype(jnp.float32), vecs)
    return out[:B]


def _reference(node_emb, emb_smt, emb_CE, stateVec, attvec, eps=_EPS):
    """Pure-JAX batched replica of CFG_Embedding.forward."""
    att = jnp.broadcast_to(attvec, stateVec.shape)
    w = stateVec @ node_emb.T                       # (B, N)  == weighted1 per instance
    cfg = w @ node_emb                              # (B, D)

    def cos(a, b):
        num = jnp.sum(a * b, axis=-1)
        den = jnp.maximum(jnp.linalg.norm(a, axis=-1), eps) * \
              jnp.maximum(jnp.linalg.norm(b, axis=-1), eps)
        return num / den

    weis = jnp.stack([cos(cfg, att), cos(emb_smt, att), cos(emb_CE, att)], axis=-1)
    swis = jax.nn.softmax(weis, axis=-1)            # (B, 3)
    return swis[:, 0:1] * cfg + swis[:, 1:2] * emb_smt + swis[:, 2:3] * emb_CE


if __name__ == "__main__":
    key = jax.random.PRNGKey(0)
    k1, k2, k3, k4, k5 = jax.random.split(key, 5)

    B = 16                                                    # batch of forward() calls
    node_emb = jax.random.normal(k1, (N, D), jnp.float32)     # stand-in encoder output
    attvec   = jax.random.normal(k2, (1, D), jnp.float32)     # parameter attvec
    emb_smt  = jax.random.normal(k3, (B, D), jnp.float32)
    emb_CE   = jax.random.normal(k4, (B, D), jnp.float32)
    stateVec = jax.random.normal(k5, (B, D), jnp.float32)

    out = cfg_embedding_forward(node_emb, emb_smt, emb_CE, stateVec, attvec)
    out = jax.block_until_ready(out)

    ref = _reference(node_emb, emb_smt, emb_CE, stateVec, attvec)
    assert out.shape == (B, D)
    # tolerance accounts for the EUP approximate reciprocal in the softmax denominator
    assert jnp.allclose(out, ref, atol=5e-3, rtol=5e-3), \
        float(jnp.max(jnp.abs(out - ref)))

    print("KERNEL_OK")
</pallas_src>

<mosaic_0001>
module attributes {stable_mosaic.version = 11 : i64} {
  func.func @cfg_embedding_kernel(%arg0: i32, %arg1: memref<8x32xf32, #tpu.memory_space<vmem>>, %arg2: memref<4x8x32xf32, #tpu.memory_space<vmem>>, %arg3: memref<8x32xf32, #tpu.memory_space<vmem>>) attributes {dimension_semantics = [#tpu.dimension_semantics<parallel>], iteration_bounds = array<i64: 2>, scalar_prefetch = 0 : i64, scratch_operands = 0 : i64, tpu.core_type = #tpu.core_type<tc>, window_params = [{pipeline_mode = #tpu.pipeline_mode<synchronous>, transform_indices = @transform_0, window_bounds = array<i64: 8, 32>}, {transform_indices = @transform_1, window_bounds = array<i64: 4, 8, 32>}, {transform_indices = @transform_2, window_bounds = array<i64: 8, 32>}]} {
    %c0 = arith.constant 0 : index
    %c0_0 = arith.constant 0 : index
    %0 = vector.load %arg1[%c0, %c0_0] : memref<8x32xf32, #tpu.memory_space<vmem>>, vector<8x32xf32>
    %c0_1 = arith.constant 0 : index
    %c0_2 = arith.constant 0 : index
    %c0_3 = arith.constant 0 : index
    %1 = vector.load %arg2[%c0_1, %c0_2, %c0_3] : memref<4x8x32xf32, #tpu.memory_space<vmem>>, vector<1x8x32xf32>
    %2 = vector.shape_cast %1 : vector<1x8x32xf32> to vector<8x32xf32>
    %c1 = arith.constant 1 : index
    %c0_4 = arith.constant 0 : index
    %c0_5 = arith.constant 0 : index
    %3 = vector.load %arg2[%c1, %c0_4, %c0_5] : memref<4x8x32xf32, #tpu.memory_space<vmem>>, vector<1x8x32xf32>
    %4 = vector.shape_cast %3 : vector<1x8x32xf32> to vector<8x32xf32>
    %c2 = arith.constant 2 : index
    %c0_6 = arith.constant 0 : index
    %c0_7 = arith.constant 0 : index
    %5 = vector.load %arg2[%c2, %c0_6, %c0_7] : memref<4x8x32xf32, #tpu.memory_space<vmem>>, vector<1x8x32xf32>
    %6 = vector.shape_cast %5 : vector<1x8x32xf32> to vector<8x32xf32>
    %c3 = arith.constant 3 : index
    %c0_8 = arith.constant 0 : index
    %c0_9 = arith.constant 0 : index
    %7 = vector.load %arg2[%c3, %c0_8, %c0_9] : memref<4x8x32xf32, #tpu.memory_space<vmem>>, vector<1x8x32xf32>
    %8 = vector.shape_cast %7 : vector<1x8x32xf32> to vector<8x32xf32>
    %cst = arith.constant dense<0.000000e+00> : vector<8x8xf32>
    %9 = tpu.matmul %2, %0, %cst {dimension_numbers = #tpu.dot_dimension_numbers<[1], [1], [0], [0], [0, 0, 1, 0], [], []>} : vector<8x32xf32>, vector<8x32xf32>, vector<8x8xf32> -> vector<8x8xf32>
    %cst_10 = arith.constant dense<0.000000e+00> : vector<8x32xf32>
    %10 = tpu.matmul %9, %0, %cst_10 {dimension_numbers = #tpu.dot_dimension_numbers<[1], [0], [0], [1], [0, 0, 1, 1], [], []>} : vector<8x8xf32>, vector<8x32xf32>, vector<8x32xf32> -> vector<8x32xf32>
    %11 = arith.mulf %4, %4 : vector<8x32xf32>
    %cst_11 = arith.constant dense<0.000000e+00> : vector<8xf32>
    %12 = vector.multi_reduction <add>, %11, %cst_11 [1] : vector<8x32xf32> to vector<8xf32>
    %13 = vector.shape_cast %12 : vector<8xf32> to vector<8x1xf32>
    %cst_12 = arith.constant 1.000000e-16 : f32
    %14 = vector.broadcast %cst_12 : f32 to vector<8x1xf32>
    %15 = arith.maximumf %13, %14 : vector<8x1xf32>
    %16 = math.rsqrt %15 : vector<8x1xf32>
    %17 = arith.mulf %10, %4 : vector<8x32xf32>
    %cst_13 = arith.constant dense<0.000000e+00> : vector<8xf32>
    %18 = vector.multi_reduction <add>, %17, %cst_13 [1] : vector<8x32xf32> to vector<8xf32>
    %19 = vector.shape_cast %18 : vector<8xf32> to vector<8x1xf32>
    %20 = arith.mulf %10, %10 : vector<8x32xf32>
    %cst_14 = arith.constant dense<0.000000e+00> : vector<8xf32>
    %21 = vector.multi_reduction <add>, %20, %cst_14 [1] : vector<8x32xf32> to vector<8xf32>
    %22 = vector.shape_cast %21 : vector<8xf32> to vector<8x1xf32>
    %cst_15 = arith.constant 1.000000e-16 : f32
    %23 = vector.broadcast %cst_15 : f32 to vector<8x1xf32>
    %24 = arith.maximumf %22, %23 : vector<8x1xf32>
    %25 = math.rsqrt %24 : vector<8x1xf32>
    %26 = arith.mulf %19, %25 : vector<8x1xf32>
    %27 = arith.mulf %26, %16 : vector<8x1xf32>
    %28 = arith.mulf %6, %4 : vector<8x32xf32>
    %cst_16 = arith.constant dense<0.000000e+00> : vector<8xf32>
    %29 = vector.multi_reduction <add>, %28, %cst_16 [1] : vector<8x32xf32> to vector<8xf32>
    %30 = vector.shape_cast %29 : vector<8xf32> to vector<8x1xf32>
    %31 = arith.mulf %6, %6 : vector<8x32xf32>
    %cst_17 = arith.constant dense<0.000000e+00> : vector<8xf32>
    %32 = vector.multi_reduction <add>, %31, %cst_17 [1] : vector<8x32xf32> to vector<8xf32>
    %33 = vector.shape_cast %32 : vector<8xf32> to vector<8x1xf32>
    %cst_18 = arith.constant 1.000000e-16 : f32
    %34 = vector.broadcast %cst_18 : f32 to vector<8x1xf32>
    %35 = arith.maximumf %33, %34 : vector<8x1xf32>
    %36 = math.rsqrt %35 : vector<8x1xf32>
    %37 = arith.mulf %30, %36 : vector<8x1xf32>
    %38 = arith.mulf %37, %16 : vector<8x1xf32>
    %39 = arith.mulf %8, %4 : vector<8x32xf32>
    %cst_19 = arith.constant dense<0.000000e+00> : vector<8xf32>
    %40 = vector.multi_reduction <add>, %39, %cst_19 [1] : vector<8x32xf32> to vector<8xf32>
    %41 = vector.shape_cast %40 : vector<8xf32> to vector<8x1xf32>
    %42 = arith.mulf %8, %8 : vector<8x32xf32>
    %cst_20 = arith.constant dense<0.000000e+00> : vector<8xf32>
    %43 = vector.multi_reduction <add>, %42, %cst_20 [1] : vector<8x32xf32> to vector<8xf32>
    %44 = vector.shape_cast %43 : vector<8xf32> to vector<8x1xf32>
    %cst_21 = arith.constant 1.000000e-16 : f32
    %45 = vector.broadcast %cst_21 : f32 to vector<8x1xf32>
    %46 = arith.maximumf %44, %45 : vector<8x1xf32>
    %47 = math.rsqrt %46 : vector<8x1xf32>
    %48 = arith.mulf %41, %47 : vector<8x1xf32>
    %49 = arith.mulf %48, %16 : vector<8x1xf32>
    %50 = arith.maximumf %27, %38 : vector<8x1xf32>
    %51 = arith.maximumf %50, %49 : vector<8x1xf32>
    %52 = arith.subf %27, %51 : vector<8x1xf32>
    %53 = math.exp %52 : vector<8x1xf32>
    %54 = arith.subf %38, %51 : vector<8x1xf32>
    %55 = math.exp %54 : vector<8x1xf32>
    %56 = arith.subf %49, %51 : vector<8x1xf32>
    %57 = math.exp %56 : vector<8x1xf32>
    %58 = arith.addf %53, %55 : vector<8x1xf32>
    %59 = arith.addf %58, %57 : vector<8x1xf32>
    %60 = tpu.reciprocal %59 {approx = true} : vector<8x1xf32> -> vector<8x1xf32>
    %61 = vector.broadcast %53 : vector<8x1xf32> to vector<8x32xf32>
    %62 = arith.mulf %61, %10 : vector<8x32xf32>
    %63 = vector.broadcast %55 : vector<8x1xf32> to vector<8x32xf32>
    %64 = arith.mulf %63, %6 : vector<8x32xf32>
    %65 = arith.addf %62, %64 : vector<8x32xf32>
    %66 = vector.broadcast %57 : vector<8x1xf32> to vector<8x32xf32>
    %67 = arith.mulf %66, %8 : vector<8x32xf32>
    %68 = arith.addf %65, %67 : vector<8x32xf32>
    %69 = vector.broadcast %60 : vector<8x1xf32> to vector<8x32xf32>
    %70 = arith.mulf %68, %69 : vector<8x32xf32>
    %c0_22 = arith.constant 0 : index
    %c0_23 = arith.constant 0 : index
    %71 = vector.load %arg3[%c0_22, %c0_23] : memref<8x32xf32, #tpu.memory_space<vmem>>, vector<8x32xf32>
    tpu.vector_store %arg3[%c0_22, %c0_23], %70 {strides = array<i32>} : memref<8x32xf32, #tpu.memory_space<vmem>>, vector<8x32xf32>,
    return
  }
  func.func @transform_0(%arg0: i32) -> (i32, i32) {
    %c0_i32 = arith.constant 0 : i32
    %c0_i32_0 = arith.constant 0 : i32
    %c0_i32_1 = arith.constant 0 : i32
    return %c0_i32, %c0_i32_0 : i32, i32
  }
  func.func @transform_1(%arg0: i32) -> (i32, i32, i32) {
    %c0_i32 = arith.constant 0 : i32
    %c0_i32_0 = arith.constant 0 : i32
    %c0_i32_1 = arith.constant 0 : i32
    return %c0_i32, %arg0, %c0_i32_0 : i32, i32, i32
  }
  func.func @transform_2(%arg0: i32) -> (i32, i32) {
    %c0_i32 = arith.constant 0 : i32
    %c0_i32_0 = arith.constant 0 : i32
    return %arg0, %c0_i32 : i32, i32
  }
}

</mosaic_0001>

<llo_original>
// kernel: tpu_custom_call.1
$region0: #{tpu_custom_call.1}
  #allocation0 [shape = 'u32[]', space=smem, size = 0x4, offset = 0x4, fixed_abs, tag = 'smem constant byte address 0x4 - core index']
  #allocation1 [shape = 'u32[72,128]{1,0:T(1,128)}', space=vmem, size = 0x9000, scoped, tag = 'internal scratch']
  %s0 = inlined_call_operand.hbm [shape: f32[8,32], index: 0, kind: input, shape index: {}]
  %s1 = inlined_call_operand.hbm [shape: f32[4,16,32], index: 1, kind: input, shape index: {}]
  %s2 = inlined_call_operand.hbm [shape: f32[16,32], index: 2, kind: output, shape index: {}]
  %s3 = sld [smem:[#allocation0]]
  $region49: #{tpu_custom_call.1} parent=0
    _
  %s5 = ssub.s32 1, %s3
  %s6 = scalar_select 0, %s5, %s3
  $region1: #{tpu_custom_call.1} parent=0
    #allocation2 [shape = 'u8[4096]{0}', space=vmem, size = 0x1000, scoped, tag = 'input window, operand 0, single buffered']
    #allocation3 [shape = 's32[2]{0}', space=sflag, size = 0x8, scoped, tag = 'scoped memory for tpu_custom_call.1']
    #allocation4 [shape = 's32[2]{0}', space=sflag, size = 0x8, scoped, tag = 'scoped memory for tpu_custom_call.1']
    #allocation5 [shape = 'u8[32768]{0}', space=vmem, size = 0x8000, scoped, tag = 'input window, operand 1']
    #allocation6 [shape = 's32[2]{0}', space=sflag, size = 0x8, scoped, tag = 'scoped memory for tpu_custom_call.1']
    #allocation7 [shape = 'u8[8192]{0}', space=vmem, size = 0x2000, scoped, tag = 'output window, operand 0']
    %7 = vsyncpa [#allocation3], 0
    %8 = vsyncpa [#allocation6], 0
    %s9 = scalar_lea.sflag [#allocation6], 1
    %10 = vsyncpa %s9, 0
    %11 = vsyncpa [#allocation4], 0
    %s12 = scalar_lea.sflag [#allocation4], 1
    %13 = vsyncpa %s12, 0
    loop: start=0, step=1, limit=4
    $region2: #{tpu_custom_call.1} parent=1 // loop_pre_header
      _
    $region3: #{tpu_custom_call.1} parent=1 // loop_header
      %s15 = sphi 0, %s19
      %p16 = scmp.ge.s32.totalorder %s15, 4
      %s23 = sphi 0, %s23
      %s25 = sphi 0, %s23
      %s26 = sphi 0, %s25
      %s40 = sphi 0, %s26
      %s46 = sphi 0, %s48
      %s49 = sphi 0, %s46
      %s50 = sphi 0, %s49
      %s66 = sphi 0, %s50
      %s72 = sphi 0, %s74
      %s75 = sphi 0, %s72
      %s76 = sphi 0, %s75
      %s92 = sphi 0, %s76
    $region4: #{tpu_custom_call.1} parent=1 // loop_header_branch
      %18 = sbr.rel (%p16) target = $region8
    $region5: #{tpu_custom_call.1} parent=1 // loop_body
      %s20 = ssub.s32 %s15, 1
      %s21 = ssub.s32 %s15, 2
      %s22 = sadd.s32 %s15, 1
      %s24 = sadd.s32 %s23, 1
      %p27 = scmp.eq.s32.totalorder %s15, 1
      %p28 = scmp.ne.s32.totalorder %s23, %s25
      %p29 = scmp.eq.s32.totalorder %s15, 0
      %p30 = por %p28, %p29
      %p31 = scmp.ne.s32.totalorder %s23, %s25
      %p32 = scmp.eq.s32.totalorder %s20, 1
      %p33 = por %p31, %p32
      %p34 = scmp.ne.s32.totalorder %s25, %s26
      %p35 = scmp.eq.s32.totalorder %s20, 0
      %p36 = por %p34, %p35
      %p37 = scmp.ne.s32.totalorder %s25, %s26
      %p38 = scmp.eq.s32.totalorder %s21, 1
      %p39 = por %p37, %p38
      %p41 = scmp.ne.s32.totalorder %s26, %s40
      %p42 = scmp.eq.s32.totalorder %s21, 0
      %p43 = por %p41, %p42
      %s44 = ssub.s32 %s15, %s22
      %p45 = scmp.eq.s32.totalorder %s44, 0
      %s47 = sadd.s32 %s46, 1
      %s48 = scalar_select %p45, %s46, %s47
      %p51 = pneg %p45
      %p52 = scmp.eq.s32.totalorder %s15, 1
      %p53 = por %p51, %p52
      %p54 = scmp.ne.s32.totalorder %s46, %s49
      %p55 = scmp.eq.s32.totalorder %s15, 0
      %p56 = por %p54, %p55
      %p57 = scmp.ne.s32.totalorder %s46, %s49
      %p58 = scmp.eq.s32.totalorder %s20, 1
      %p59 = por %p57, %p58
      %p60 = scmp.ne.s32.totalorder %s49, %s50
      %p61 = scmp.eq.s32.totalorder %s20, 0
      %p62 = por %p60, %p61
      %p63 = scmp.ne.s32.totalorder %s49, %s50
      %p64 = scmp.eq.s32.totalorder %s21, 1
      %p65 = por %p63, %p64
      %p67 = scmp.ne.s32.totalorder %s50, %s66
      %p68 = scmp.eq.s32.totalorder %s21, 0
      %p69 = por %p67, %p68
      %s70 = ssub.s32 %s15, %s22
      %p71 = scmp.eq.s32.totalorder %s70, 0
      %s73 = sadd.s32 %s72, 1
      %s74 = scalar_select %p71, %s72, %s73
      %p77 = pneg %p71
      %p78 = scmp.eq.s32.totalorder %s15, 1
      %p79 = por %p77, %p78
      %p80 = scmp.ne.s32.totalorder %s72, %s75
      %p81 = scmp.eq.s32.totalorder %s15, 0
      %p82 = por %p80, %p81
      %p83 = scmp.ne.s32.totalorder %s72, %s75
      %p84 = scmp.eq.s32.totalorder %s20, 1
      %p85 = por %p83, %p84
      %p86 = scmp.ne.s32.totalorder %s75, %s76
      %p87 = scmp.eq.s32.totalorder %s20, 0
      %p88 = por %p86, %p87
      %p89 = scmp.ne.s32.totalorder %s75, %s76
      %p90 = scmp.eq.s32.totalorder %s21, 1
      %p91 = por %p89, %p90
      %p93 = scmp.ne.s32.totalorder %s76, %s92
      %p94 = scmp.eq.s32.totalorder %s21, 0
      %p95 = por %p93, %p94
      %p96 = scmp.le.s32.totalorder 1, %s15
      %p97 = scmp.lt.s32.totalorder %s15, 3
      %p98 = pnand %p96, %p97
      %p99 = pneg %p98
      // Predicated region
      $region9: #{tpu_custom_call.1} parent=5 // pred_check
        _
      $region10: #{tpu_custom_call.1} parent=5 // pred_check_branch
        %101 = sbr.rel (%p98) target = $region12
      $region11: #{tpu_custom_call.1} parent=5 // pred_region
        %s102 = ssub.s32 %s15, 1
        // Predicated region
        $region13: #{tpu_custom_call.1} parent=11 // pred_check
          %p103 = pneg %p36
        $region14: #{tpu_custom_call.1} parent=11 // pred_check_branch
          %105 = sbr.rel (%p103) target = $region16
        $region15: #{tpu_custom_call.1} parent=11 // pred_region
          %107 = vsyncadd [#allocation3], 0
          %s109 = sshll.u32 %s0, 4
          %s110 = int_to_ptr.hbm [resolvable:$true] %s109
          %s111 = sshll.u32 [#allocation2], 4
          %s112 = int_to_ptr.vmem [resolvable:$true] %s111
          %114 = dma.hbm_to_vmem [thread:$0]  %s110, 128, %s112, [#allocation3]
        $region16: #{tpu_custom_call.1} parent=11 // pred_fallthru
          _
      $region12: #{tpu_custom_call.1} parent=5 // pred_fallthru
        _
      %p115 = scmp.lt.s32.totalorder %s15, 2
      // Predicated region
      $region17: #{tpu_custom_call.1} parent=5 // pred_check
        %p116 = pneg %p115
      $region18: #{tpu_custom_call.1} parent=5 // pred_check_branch
        %118 = sbr.rel (%p116) target = $region20
      $region19: #{tpu_custom_call.1} parent=5 // pred_region
        // Predicated region
        $region21: #{tpu_custom_call.1} parent=19 // pred_check
          %p119 = pneg %p56
        $region22: #{tpu_custom_call.1} parent=19 // pred_check_branch
          %121 = sbr.rel (%p119) target = $region24
        $region23: #{tpu_custom_call.1} parent=19 // pred_region
          %s122 = sand.u32 %s46, 1
          %s123 = scalar_lea.sflag [#allocation6], %s122
          %s124 = sand.u32 %s46, 1
          %s125 = smul.addr %s124, 32
          %s126 = scalar_lea.vmem [#allocation5], %s125
          %128 = vsyncadd %s123, 0
          %s129 = smul.addr %s15, 8
          %s130 = scalar_lea.hbm %s1, %s129
          %s131 = sshll.u32 %s130, 4
          %s132 = int_to_ptr.hbm [resolvable:$true] %s131
          %s133 = sshll.u32 %s126, 4
          %s134 = int_to_ptr.vmem [resolvable:$true] %s133
          %139 = dma.hbm_to_vmem [thread:$0]  %s132, 512, %s134, %s123, 256, 128, 8
        $region24: #{tpu_custom_call.1} parent=19 // pred_fallthru
          _
      $region20: #{tpu_custom_call.1} parent=5 // pred_fallthru
        _
      %p140 = scmp.le.s32.totalorder 1, %s15
      %p141 = scmp.lt.s32.totalorder %s15, 3
      %p142 = pnand %p140, %p141
      %p143 = pneg %p142
      // Predicated region
      $region25: #{tpu_custom_call.1} parent=5 // pred_check
        _
      $region26: #{tpu_custom_call.1} parent=5 // pred_check_branch
        %145 = sbr.rel (%p142) target = $region28
      $region27: #{tpu_custom_call.1} parent=5 // pred_region
        %s146 = ssub.s32 %s15, 1
        // Predicated region
        $region29: #{tpu_custom_call.1} parent=27 // pred_check
          %p147 = pneg %p36
        $region30: #{tpu_custom_call.1} parent=27 // pred_check_branch
          %149 = sbr.rel (%p147) target = $region32
        $region31: #{tpu_custom_call.1} parent=27 // pred_region
          %151 = dma.done [#allocation3], 128
        $region32: #{tpu_custom_call.1} parent=27 // pred_fallthru
          _
        %s152 = sand.u32 %s49, 1
        %s153 = scalar_lea.sflag [#allocation6], %s152
        %s154 = sand.u32 %s49, 1
        %s155 = smul.addr %s154, 32
        %s156 = scalar_lea.vmem [#allocation5], %s155
        // Predicated region
        $region33: #{tpu_custom_call.1} parent=27 // pred_check
          %p157 = pneg %p62
        $region34: #{tpu_custom_call.1} parent=27 // pred_check_branch
          %159 = sbr.rel (%p157) target = $region36
        $region35: #{tpu_custom_call.1} parent=27 // pred_region
          %161 = dma.done %s153, 512
        $region36: #{tpu_custom_call.1} parent=27 // pred_fallthru
          _
        %p162 = pneg %p36
        %p163 = pneg %p33
        %s164 = sand.u32 %s49, 1
        %s165 = scalar_lea.sflag [#allocation6], %s164
        %s166 = sand.u32 %s49, 1
        %s167 = smul.addr %s166, 32
        %s168 = scalar_lea.vmem [#allocation5], %s167
        %p169 = pneg %p62
        %p170 = pneg %p59
        %p171 = pneg %p88
        %p172 = pneg %p85
        %s173 = sand.u32 %s75, 1
        %s174 = scalar_lea.sflag [#allocation4], %s173
        %s175 = sand.u32 %s75, 1
        %s176 = smul.addr %s175, 8
        %s177 = scalar_lea.vmem [#allocation7], %s176
        %v178 = vld [vmem:[#allocation2] sm:$0xff]
        %v179 = vld [vmem:[%s156] sm:$0xff]
        %s180 = scalar_lea.vmem %s156, 8 [#allocation5]
        %v181 = vld [vmem:[%s180] sm:$0xff]
        %s182 = scalar_lea.vmem %s156, 16 [#allocation5]
        %v183 = vld [vmem:[%s182] sm:$0xff]
        %s184 = scalar_lea.vmem %s156, 24 [#allocation5]
        %v185 = vld [vmem:[%s184] sm:$0xff]
        %vm186 = vcmask 261120
        %v188 = vsel %vm186, %v179, 0
        %v191 = vsel %vm186, %v178, 0
        %193 = vmatpush.xpose.msra.mxu0 0.0
        %194 = vmatpush.xpose.msra.mxu0 0.0
        %195 = vmatpush.xpose.msra.mxu0 0.0
        %196 = vmatpush.xpose.msra.mxu0 0.0
        %197 = vmatpush.xpose.msra.mxu0 0.0
        %198 = vmatpush.xpose.msra.mxu0 0.0
        %199 = vmatpush.xpose.msra.mxu0 0.0
        %200 = vmatpush.xpose.msra.mxu0 0.0
        %201 = vmatpush.xpose.msra.mxu0 0.0
        %202 = vmatpush.xpose.msra.mxu0 0.0
        %203 = vmatpush.xpose.msra.mxu0 0.0
        %204 = vmatpush.xpose.msra.mxu0 0.0
        %205 = vmatpush.xpose.msra.mxu0 0.0
        %206 = vmatpush.xpose.msra.mxu0 0.0
        %207 = vmatpush.xpose.msra.mxu0 0.0
        %208 = vmatpush.xpose.msra.mxu0 %v191
        %209 = vmatmul.f32.gmra.mxu0 %v188
        %v210 = vpop.f32.mrf.mxu0
        %v211 = vadd.f32 0.0, %v210
        %212 = vdwg.mxu0
        %vm213 = vcmask 64512
        %v215 = vsel %vm213, %v211, 0
        %217 = vmatpush.msra.mxu0 0.0
        %218 = vmatpush.msra.mxu0 0.0
        %219 = vmatpush.msra.mxu0 0.0
        %220 = vmatpush.msra.mxu0 0.0
        %221 = vmatpush.msra.mxu0 0.0
        %222 = vmatpush.msra.mxu0 0.0
        %223 = vmatpush.msra.mxu0 0.0
        %224 = vmatpush.msra.mxu0 0.0
        %225 = vmatpush.msra.mxu0 0.0
        %226 = vmatpush.msra.mxu0 0.0
        %227 = vmatpush.msra.mxu0 0.0
        %228 = vmatpush.msra.mxu0 0.0
        %229 = vmatpush.msra.mxu0 0.0
        %230 = vmatpush.msra.mxu0 0.0
        %231 = vmatpush.msra.mxu0 0.0
        %232 = vmatpush.msra.mxu0 %v178
        %233 = vmatmul.f32.gmra.mxu0 %v215
        %v234 = vpop.f32.mrf.mxu0
        %v235 = vadd.f32 0.0, %v234
        %236 = vdwg.mxu0
        %v237 = vmul.f32 %v181, %v181
        %v238 = vsel %vm186, %v237, 0.0
        %239 = vadd.xlane.f32.xlu0 %v238
        %v240 = vpop.xlane.xlu0 %239
        %v241 = vmax.f32 %v240, 1e-16
        %v242 = vrsqrt.pop %v241
        %v243 = vmul.f32 %v242, %v241
        %v244 = vmul.f32 %v243, %v242
        %v245 = vmul.f32 0.5, %v244
        %v246 = vsub.f32 1.5, %v245
        %v247 = vmul.f32 %v242, %v246
        %vm248 = vweird.f32 %v241
        %vm249 = vweird.f32 %v242
        %vm250 = vmor %vm248, %vm249
        %v251 = vsel %vm250, %v242, %v247
        %v252 = vmul.f32 %v235, %v181
        %v253 = vsel %vm186, %v252, 0.0
        %254 = vadd.xlane.f32.xlu0 %v253
        %v255 = vpop.xlane.xlu0 %254
        %v256 = vmul.f32 %v235, %v235
        %v257 = vsel %vm186, %v256, 0.0
        %258 = vadd.xlane.f32.xlu0 %v257
        %v259 = vpop.xlane.xlu0 %258
        %v260 = vmax.f32 %v259, 1e-16
        %v261 = vrsqrt.pop %v260
        %v262 = vmul.f32 %v261, %v260
        %v263 = vmul.f32 %v262, %v261
        %v264 = vmul.f32 0.5, %v263
        %v265 = vsub.f32 1.5, %v264
        %v266 = vmul.f32 %v261, %v265
        %vm267 = vweird.f32 %v260
        %vm268 = vweird.f32 %v261
        %vm269 = vmor %vm267, %vm268
        %v270 = vsel %vm269, %v261, %v266
        %v271 = vmul.f32 %v255, %v270
        %v272 = vmul.f32 %v271, %v251
        %v273 = vmul.f32 %v183, %v181
        %v274 = vsel %vm186, %v273, 0.0
        %275 = vadd.xlane.f32.xlu0 %v274
        %v276 = vpop.xlane.xlu0 %275
        %v277 = vmul.f32 %v183, %v183
        %v278 = vsel %vm186, %v277, 0.0
        %279 = vadd.xlane.f32.xlu0 %v278
        %v280 = vpop.xlane.xlu0 %279
        %v281 = vmax.f32 %v280, 1e-16
        %v282 = vrsqrt.pop %v281
        %v283 = vmul.f32 %v282, %v281
        %v284 = vmul.f32 %v283, %v282
        %v285 = vmul.f32 0.5, %v284
        %v286 = vsub.f32 1.5, %v285
        %v287 = vmul.f32 %v282, %v286
        %vm288 = vweird.f32 %v281
        %vm289 = vweird.f32 %v282
        %vm290 = vmor %vm288, %vm289
        %v291 = vsel %vm290, %v282, %v287
        %v292 = vmul.f32 %v276, %v291
        %v293 = vmul.f32 %v292, %v251
        %v294 = vmul.f32 %v185, %v181
        %v295 = vsel %vm186, %v294, 0.0
        %296 = vadd.xlane.f32.xlu0 %v295
        %v297 = vpop.xlane.xlu0 %296
        %v298 = vmul.f32 %v185, %v185
        %v299 = vsel %vm186, %v298, 0.0
        %300 = vadd.xlane.f32.xlu0 %v299
        %v301 = vpop.xlane.xlu0 %300
        %v302 = vmax.f32 %v301, 1e-16
        %v303 = vrsqrt.pop %v302
        %v304 = vmul.f32 %v303, %v302
        %v305 = vmul.f32 %v304, %v303
        %v306 = vmul.f32 0.5, %v305
        %v307 = vsub.f32 1.5, %v306
        %v308 = vmul.f32 %v303, %v307
        %vm309 = vweird.f32 %v302
        %vm310 = vweird.f32 %v303
        %vm311 = vmor %vm309, %vm310
        %v312 = vsel %vm311, %v303, %v308
        %v313 = vmul.f32 %v297, %v312
        %v314 = vmul.f32 %v313, %v251
        %v315 = vmax.f32 %v272, %v293
        %v316 = vmax.f32 %v315, %v314
        %v317 = vsub.f32 %v272, %v316
        %v318 = vmul.f32 %v317, 1.442695
        %v319 = vpow.pop %v318
        %v320 = vsub.f32 %v293, %v316
        %v321 = vmul.f32 %v320, 1.442695
        %v322 = vpow.pop %v321
        %v323 = vsub.f32 %v314, %v316
        %v324 = vmul.f32 %v323, 1.442695
        %v325 = vpow.pop %v324
        %v326 = vadd.f32 %v319, %v322
        %v327 = vadd.f32 %v326, %v325
        %v328 = vrcp.pop %v327
        %v329 = vmul.f32 %v319, %v235
        %v330 = vmul.f32 %v322, %v183
        %v331 = vadd.f32 %v329, %v330
        %v332 = vmul.f32 %v325, %v185
        %v333 = vadd.f32 %v331, %v332
        %v334 = vmul.f32 %v333, %v328
        %335 = vst.msk [vmem:[%s177] sm:$0xff] %vm186, %v334
        %s336 = sand.u32 %s75, 1
        %s337 = scalar_lea.sflag [#allocation4], %s336
        %s338 = sand.u32 %s75, 1
        %s339 = smul.addr %s338, 8
        %s340 = scalar_lea.vmem [#allocation7], %s339
        // Predicated region
        $region37: #{tpu_custom_call.1} parent=27 // pred_check
          %p341 = pneg %p85
        $region38: #{tpu_custom_call.1} parent=27 // pred_check_branch
          %343 = sbr.rel (%p341) target = $region40
        $region39: #{tpu_custom_call.1} parent=27 // pred_region
          %345 = vsyncadd %s337, 0
          %s346 = smul.addr %s20, 8
          %s347 = scalar_lea.hbm %s2, %s346
          %s349 = sshll.u32 %s340, 4
          %s350 = int_to_ptr.vmem [resolvable:$true] %s349
          %s351 = sshll.u32 %s347, 4
          %s352 = int_to_ptr.hbm [resolvable:$true] %s351
          %354 = dma.vmem_to_hbm [thread:$0]  %s350, 128, %s352, %s337
        $region40: #{tpu_custom_call.1} parent=27 // pred_fallthru
          _
      $region28: #{tpu_custom_call.1} parent=5 // pred_fallthru
        _
      %p355 = scmp.le.s32.totalorder 2, %s15
      // Predicated region
      $region41: #{tpu_custom_call.1} parent=5 // pred_check
        %p356 = pneg %p355
      $region42: #{tpu_custom_call.1} parent=5 // pred_check_branch
        %358 = sbr.rel (%p356) target = $region44
      $region43: #{tpu_custom_call.1} parent=5 // pred_region
        %s359 = ssub.s32 %s15, 2
        // Predicated region
        $region45: #{tpu_custom_call.1} parent=43 // pred_check
          %p360 = pneg %p91
        $region46: #{tpu_custom_call.1} parent=43 // pred_check_branch
          %362 = sbr.rel (%p360) target = $region48
        $region47: #{tpu_custom_call.1} parent=43 // pred_region
          %s363 = sand.u32 %s76, 1
          %s364 = scalar_lea.sflag [#allocation4], %s363
          %s365 = sand.u32 %s76, 1
          %s366 = smul.addr %s365, 8
          %s367 = scalar_lea.vmem [#allocation7], %s366
          %369 = dma.done %s364, 128
        $region48: #{tpu_custom_call.1} parent=43 // pred_fallthru
          _
      $region44: #{tpu_custom_call.1} parent=5 // pred_fallthru
        _
    $region6: #{tpu_custom_call.1} parent=1 // loop_footer
      %s19 = sadd.s32 1, %s15
    $region7: #{tpu_custom_call.1} parent=1 // loop_footer_branch
      %14 = sbr.rel target = $region3
    $region8: #{tpu_custom_call.1} parent=1 // loop_exit
      _
    %370 = vsyncpa [#allocation3], 1
    %s371 = scalar_lea.sflag [#allocation3], 1
    %372 = vsyncpa %s371, 1
    %373 = vsyncpa [#allocation6], 1
    %s374 = scalar_lea.sflag [#allocation6], 1
    %375 = vsyncpa %s374, 1
    %376 = vsyncpa [#allocation4], 1
    %s377 = scalar_lea.sflag [#allocation4], 1
    %378 = vsyncpa %s377, 1

</llo_original>
